<compile_context>
chip_gen: v7x
topology: tpu7x:2x2x1
jax: 0.10.0
libtpu: 0.0.40
codegen_flags: <defaults>
</compile_context>

<pallas_src>
import functools

import jax
import jax.numpy as jnp
from jax.experimental import pallas as pl
from jax.experimental.pallas import tpu as pltpu

EPS = 1e-5


def convblock_kernel(xs_ref, w_em_ref, w_om_ref, w0_ref, w2_ref,
                     b_ref, g_ref, be_ref, o_ref,
                     sum_sc, m2_sc, msq_sc, *, c_in, lo, total_n):
    # xs_ref : (2*C_in, tLo) rows [x_even; x_odd], lane = n*Lo + m (sample-aligned tile)
    # w_em/w_om : (co_blk, 2*C_in)  fused center/right (even) and left/center (odd) taps
    # w0/w2     : (co_blk, C_in)    boundary taps applied to rolled streams
    # b/g/be    : (co_blk, 1)
    # o_ref     : (co_blk, tLo)     pooled output tile (lane-dense)
    # scratch   : (co_blk, 1) f32 accumulators: sum, within-tile M2, tile-mean^2 mass
    p = pl.program_id(1)            # 0 = stats pass, 1 = apply pass
    t = pl.program_id(2)
    tlo = o_ref.shape[1]
    nt = 2 * tlo                    # conv elements per channel in this tile

    @pl.when(jnp.logical_and(p == 0, t == 0))
    def _init():
        sum_sc[...] = jnp.zeros_like(sum_sc)
        m2_sc[...] = jnp.zeros_like(m2_sc)
        msq_sc[...] = jnp.zeros_like(msq_sc)

    # ---- Conv1d(k=3, padding=1), recomputed in both passes (cheaper than an
    # HBM round-trip of the (C_out, N*L) conv activations). -------------------
    s = xs_ref[...]                                       # (2*C_in, tLo)
    x_e = s[:c_in]                                        # x[:, 2m]
    x_o = s[c_in:]                                        # x[:, 2m+1]
    pos = jax.lax.broadcasted_iota(jnp.int32, (1, tlo), 1) % lo
    # x[:, 2m-1] == x_odd[m-1]; zero at the left edge of each sample.
    x_op = jnp.where(pos == 0, 0.0, pltpu.roll(x_o, 1, axis=1))
    # x[:, 2m+2] == x_even[m+1]; zero at the right edge of each sample.
    x_en = jnp.where(pos == lo - 1, 0.0, pltpu.roll(x_e, tlo - 1, axis=1))

    bias = b_ref[...]
    conv_e = (jnp.dot(w_em_ref[...], s, preferred_element_type=jnp.float32)
              + jnp.dot(w0_ref[...], x_op, preferred_element_type=jnp.float32)
              + bias)
    conv_o = (jnp.dot(w_om_ref[...], s, preferred_element_type=jnp.float32)
              + jnp.dot(w2_ref[...], x_en, preferred_element_type=jnp.float32)
              + bias)

    @pl.when(p == 0)
    def _stats():
        ts = (jnp.sum(conv_e, axis=1, keepdims=True)
              + jnp.sum(conv_o, axis=1, keepdims=True))
        tm = ts * (1.0 / nt)                               # tile mean per channel
        de = conv_e - tm
        do = conv_o - tm
        m2 = (jnp.sum(de * de, axis=1, keepdims=True)
              + jnp.sum(do * do, axis=1, keepdims=True))
        sum_sc[...] += ts
        m2_sc[...] += m2
        msq_sc[...] += (tm * tm) * jnp.float32(nt)

    @pl.when(p == 1)
    def _apply():
        inv_n = 1.0 / total_n
        mean = sum_sc[...] * inv_n
        # var = within-tile M2 / N + (avg of tile-mean^2 - global mean^2) >= 0
        var = (m2_sc[...] * inv_n
               + jnp.maximum(msq_sc[...] * inv_n - mean * mean, 0.0))
        scale = g_ref[...] * jax.lax.rsqrt(var + EPS)      # BN folded to scale/shift
        shift = be_ref[...] - scale * mean
        y_e = jnp.maximum(scale * conv_e + shift, 0.0)     # BN + ReLU
        y_o = jnp.maximum(scale * conv_o + shift, 0.0)
        o_ref[...] = jnp.maximum(y_e, y_o).astype(o_ref.dtype)   # MaxPool1d(2)


def _pick_samples_per_tile(n, lo, target_lanes=2048):
    """Samples per lane-tile.  Tiles must be sample-aligned (so in-kernel rolls
    need no cross-tile halo) and the lane width must be a multiple of 128
    unless one tile covers the whole lane axis."""
    cands = [s for s in range(1, n + 1)
             if n % s == 0 and (s * lo) % 128 == 0]
    if not cands:
        return n
    for s in cands:
        if s * lo >= target_lanes:
            return s
    return cands[-1]


def _pick_co_block(c_out, max_block=32):
    """C_out block: multiple of 8 (sublane tiling) or the full C_out."""
    if c_out <= max_block:
        return c_out
    for blk in range(max_block, 7, -8):
        if c_out % blk == 0:
            return blk
    return c_out


def conv_block(x, w, b, gamma, beta, *, pool_size=2):
    """x: (N, C_in, L) f32; w: (C_out, C_in, K); b/gamma/beta: (C_out,)."""
    N, C_in, L = x.shape
    C_out, c_in_w, K = w.shape
    assert c_in_w == C_in
    pad = 1                                   # nn.Conv1d(..., padding=1) in the module
    assert K == 2 * pad + 1, "kernel assumes the module's K=3 / padding=1 conv"
    assert pool_size == 2 and L % pool_size == 0
    Lo = L // pool_size
    NLo = N * Lo

    # ---- wrapper-side layout plumbing: even/odd de-interleave, batch fused
    # into the lane dim. -------------------------------------------------------
    x_f = x.astype(jnp.float32)
    x_e = jnp.transpose(x_f[:, :, 0::2], (1, 0, 2)).reshape(C_in, NLo)
    x_o = jnp.transpose(x_f[:, :, 1::2], (1, 0, 2)).reshape(C_in, NLo)
    xs = jnp.concatenate([x_e, x_o], axis=0)                 # (2*C_in, NLo)

    w_f = w.astype(jnp.float32)
    w0, w1, w2 = w_f[:, :, 0], w_f[:, :, 1], w_f[:, :, 2]    # (C_out, C_in) each
    w_em = jnp.concatenate([w1, w2], axis=1)   # even outputs: taps on [x_e; x_o]
    w_om = jnp.concatenate([w0, w1], axis=1)   # odd  outputs: taps on [x_e; x_o]

    b2 = b.reshape(C_out, 1).astype(jnp.float32)
    g2 = gamma.reshape(C_out, 1).astype(jnp.float32)
    be2 = beta.reshape(C_out, 1).astype(jnp.float32)

    spt = _pick_samples_per_tile(N, Lo)
    tLo = spt * Lo
    assert NLo % tLo == 0
    T = NLo // tLo
    co_blk = _pick_co_block(C_out)
    nco = C_out // co_blk

    kernel = functools.partial(convblock_kernel, c_in=C_in, lo=Lo,
                               total_n=float(N * L))

    out2 = pl.pallas_call(
        kernel,
        out_shape=jax.ShapeDtypeStruct((C_out, NLo), jnp.float32),
        grid=(nco, 2, T),                     # (C_out blocks, BN pass, lane tiles)
        in_specs=[
            pl.BlockSpec((2 * C_in, tLo), lambda co, p, t: (0, t)),
            pl.BlockSpec((co_blk, 2 * C_in), lambda co, p, t: (co, 0)),
            pl.BlockSpec((co_blk, 2 * C_in), lambda co, p, t: (co, 0)),
            pl.BlockSpec((co_blk, C_in), lambda co, p, t: (co, 0)),
            pl.BlockSpec((co_blk, C_in), lambda co, p, t: (co, 0)),
            pl.BlockSpec((co_blk, 1), lambda co, p, t: (co, 0)),
            pl.BlockSpec((co_blk, 1), lambda co, p, t: (co, 0)),
            pl.BlockSpec((co_blk, 1), lambda co, p, t: (co, 0)),
        ],
        out_specs=pl.BlockSpec((co_blk, tLo), lambda co, p, t: (co, t)),
        scratch_shapes=[pltpu.VMEM((co_blk, 1), jnp.float32)] * 3,
        compiler_params=pltpu.CompilerParams(
            dimension_semantics=("parallel", "arbitrary", "arbitrary")),
    )(xs, w_em, w_om, w0, w2, b2, g2, be2)

    # (C_out, N*Lo) -> (N, C_out, Lo): free layout plumbing in the wrapper.
    return jnp.transpose(out2.reshape(C_out, N, Lo), (1, 0, 2))


def conv_block_ref(x, w, b, gamma, beta, *, pool_size=2):
    """Pure-JAX reference with identical semantics (two-pass BN variance)."""
    conv = jax.lax.conv_general_dilated(
        x, w, window_strides=(1,), padding=[(1, 1)],
        dimension_numbers=("NCH", "OIH", "NCH"))
    conv = conv + b[None, :, None]
    mean = jnp.mean(conv, axis=(0, 2), keepdims=True)
    var = jnp.mean((conv - mean) ** 2, axis=(0, 2), keepdims=True)
    y = gamma[None, :, None] * (conv - mean) * jax.lax.rsqrt(var + EPS) \
        + beta[None, :, None]
    y = jnp.maximum(y, 0.0)                    # module's `activation` assumed ReLU
    N, C, L = y.shape
    return y.reshape(N, C, L // pool_size, pool_size).max(axis=-1)


if __name__ == "__main__":
    # Small shapes consistent with the module: Conv1d(in=4, out=8, k=3, pad=1)
    N, C_in, C_out, L, K = 2, 4, 8, 16, 3
    key = jax.random.PRNGKey(0)
    kx, kw, kb, kg, kbe = jax.random.split(key, 5)

    x = jax.random.normal(kx, (N, C_in, L), dtype=jnp.float32)
    w = 0.1 * jax.random.normal(kw, (C_out, C_in, K), dtype=jnp.float32)
    b = 0.1 * jax.random.normal(kb, (C_out,), dtype=jnp.float32)
    # PyTorch BatchNorm1d defaults are gamma=1, beta=0; perturb to exercise the path.
    gamma = 1.0 + 0.1 * jax.random.normal(kg, (C_out,), dtype=jnp.float32)
    beta = 0.1 * jax.random.normal(kbe, (C_out,), dtype=jnp.float32)
    # TODO(synk): BatchNorm running_mean/running_var updates (training-mode side
    # effect) are not modeled; they do not affect this forward output.

    out = jax.block_until_ready(conv_block(x, w, b, gamma, beta))
    ref = conv_block_ref(x, w, b, gamma, beta)
    assert out.shape == (N, C_out, L // 2)
    assert jnp.allclose(out, ref, atol=1e-4, rtol=1e-4)
    print("KERNEL_OK")
</pallas_src>

<mosaic_0001>
module attributes {stable_mosaic.version = 11 : i64} {
  func.func @convblock_kernel(%arg0: i32, %arg1: i32, %arg2: i32, %arg3: memref<8x16xf32, #tpu.memory_space<vmem>>, %arg4: memref<8x8xf32, #tpu.memory_space<vmem>>, %arg5: memref<8x8xf32, #tpu.memory_space<vmem>>, %arg6: memref<8x4xf32, #tpu.memory_space<vmem>>, %arg7: memref<8x4xf32, #tpu.memory_space<vmem>>, %arg8: memref<8x1xf32, #tpu.memory_space<vmem>>, %arg9: memref<8x1xf32, #tpu.memory_space<vmem>>, %arg10: memref<8x1xf32, #tpu.memory_space<vmem>>, %arg11: memref<8x16xf32, #tpu.memory_space<vmem>>, %arg12: memref<8x1xf32, #tpu.memory_space<vmem>>, %arg13: memref<8x1xf32, #tpu.memory_space<vmem>>, %arg14: memref<8x1xf32, #tpu.memory_space<vmem>>) attributes {dimension_semantics = [#tpu.dimension_semantics<parallel>, #tpu.dimension_semantics<arbitrary>, #tpu.dimension_semantics<arbitrary>], iteration_bounds = array<i64: 1, 2, 1>, scalar_prefetch = 0 : i64, scratch_operands = 3 : i64, tpu.core_type = #tpu.core_type<tc>, window_params = [{transform_indices = @transform_0, window_bounds = array<i64: 8, 16>}, {transform_indices = @transform_1, window_bounds = array<i64: 8, 8>}, {transform_indices = @transform_2, window_bounds = array<i64: 8, 8>}, {transform_indices = @transform_3, window_bounds = array<i64: 8, 4>}, {transform_indices = @transform_4, window_bounds = array<i64: 8, 4>}, {transform_indices = @transform_5, window_bounds = array<i64: 8, 1>}, {transform_indices = @transform_6, window_bounds = array<i64: 8, 1>}, {transform_indices = @transform_7, window_bounds = array<i64: 8, 1>}, {transform_indices = @transform_8, window_bounds = array<i64: 8, 16>}]} {
    %c0_i32 = arith.constant 0 : i32
    %0 = arith.cmpi eq, %arg1, %c0_i32 : i32
    %c0_i32_0 = arith.constant 0 : i32
    %1 = arith.cmpi eq, %arg2, %c0_i32_0 : i32
    %2 = arith.andi %0, %1 : i1
    %3 = arith.extui %2 : i1 to i32
    %c0_i32_1 = arith.constant 0 : i32
    %4 = arith.cmpi ne, %3, %c0_i32_1 : i32
    scf.if %4 {
      %cst_28 = arith.constant 0.000000e+00 : f32
      %60 = vector.broadcast %cst_28 : f32 to vector<8x1xf32>
      %c0_29 = arith.constant 0 : index
      %c0_30 = arith.constant 0 : index
      %61 = vector.load %arg12[%c0_29, %c0_30] : memref<8x1xf32, #tpu.memory_space<vmem>>, vector<8x1xf32>
      tpu.vector_store %arg12[%c0_29, %c0_30], %60 {strides = array<i32>} : memref<8x1xf32, #tpu.memory_space<vmem>>, vector<8x1xf32>,
      %cst_31 = arith.constant 0.000000e+00 : f32
      %62 = vector.broadcast %cst_31 : f32 to vector<8x1xf32>
      %c0_32 = arith.constant 0 : index
      %c0_33 = arith.constant 0 : index
      %63 = vector.load %arg13[%c0_32, %c0_33] : memref<8x1xf32, #tpu.memory_space<vmem>>, vector<8x1xf32>
      tpu.vector_store %arg13[%c0_32, %c0_33], %62 {strides = array<i32>} : memref<8x1xf32, #tpu.memory_space<vmem>>, vector<8x1xf32>,
      %cst_34 = arith.constant 0.000000e+00 : f32
      %64 = vector.broadcast %cst_34 : f32 to vector<8x1xf32>
      %c0_35 = arith.constant 0 : index
      %c0_36 = arith.constant 0 : index
      %65 = vector.load %arg14[%c0_35, %c0_36] : memref<8x1xf32, #tpu.memory_space<vmem>>, vector<8x1xf32>
      tpu.vector_store %arg14[%c0_35, %c0_36], %64 {strides = array<i32>} : memref<8x1xf32, #tpu.memory_space<vmem>>, vector<8x1xf32>,
    } else {
    }
    %c0 = arith.constant 0 : index
    %c0_2 = arith.constant 0 : index
    %5 = vector.load %arg3[%c0, %c0_2] : memref<8x16xf32, #tpu.memory_space<vmem>>, vector<8x16xf32>
    %6 = vector.extract_strided_slice %5 {offsets = [0, 0], sizes = [4, 16], strides = [1, 1]} : vector<8x16xf32> to vector<4x16xf32>
    %7 = vector.extract_strided_slice %5 {offsets = [4, 0], sizes = [4, 16], strides = [1, 1]} : vector<8x16xf32> to vector<4x16xf32>
    %8 = tpu.iota {dimensions = array<i32: 1>} : vector<1x16xi32>
    %c8_i32 = arith.constant 8 : i32
    %c0_i32_3 = arith.constant 0 : i32
    %9 = arith.cmpi eq, %c8_i32, %c0_i32_3 : i32
    %c1_i32 = arith.constant 1 : i32
    %10 = arith.select %9, %c1_i32, %c8_i32 : i32
    %11 = vector.broadcast %10 : i32 to vector<1x16xi32>
    %12 = arith.remsi %8, %11 : vector<1x16xi32>
    %c0_i32_4 = arith.constant 0 : i32
    %13 = vector.broadcast %c0_i32_4 : i32 to vector<1x16xi32>
    %14 = arith.cmpi ne, %12, %13 : vector<1x16xi32>
    %c0_i32_5 = arith.constant 0 : i32
    %15 = vector.broadcast %c0_i32_5 : i32 to vector<1x16xi32>
    %16 = arith.cmpi slt, %12, %15 : vector<1x16xi32>
    %c0_i32_6 = arith.constant 0 : i32
    %17 = arith.cmpi slt, %10, %c0_i32_6 : i32
    %18 = vector.broadcast %17 : i1 to vector<1x16xi1>
    %19 = vector.broadcast %18 : vector<1x16xi1> to vector<1x16xi1>
    %20 = arith.xori %16, %19 : vector<1x16xi1>
    %21 = arith.andi %20, %14 : vector<1x16xi1>
    %22 = vector.broadcast %10 : i32 to vector<1x16xi32>
    %23 = arith.addi %12, %22 : vector<1x16xi32>
    %24 = arith.select %21, %23, %12 : vector<1x16xi1>, vector<1x16xi32>
    %c0_i32_7 = arith.constant 0 : i32
    %25 = vector.broadcast %c0_i32_7 : i32 to vector<1x16xi32>
    %26 = arith.cmpi eq, %24, %25 : vector<1x16xi32>
    %c1_i32_8 = arith.constant 1 : i32
    %27 = tpu.dynamic_rotate %7 by %c1_i32_8 dim 1 : vector<4x16xf32>, i32 -> vector<4x16xf32>
    %cst = arith.constant 0.000000e+00 : f32
    %28 = vector.shape_cast %26 : vector<1x16xi1> to vector<1x16xi1>
    %29 = vector.broadcast %28 : vector<1x16xi1> to vector<4x16xi1>
    %30 = vector.broadcast %cst : f32 to vector<4x16xf32>
    %31 = arith.select %29, %30, %27 : vector<4x16xi1>, vector<4x16xf32>
    %c7_i32 = arith.constant 7 : i32
    %32 = vector.broadcast %c7_i32 : i32 to vector<1x16xi32>
    %33 = arith.cmpi eq, %24, %32 : vector<1x16xi32>
    %c15_i32 = arith.constant 15 : i32
    %34 = tpu.dynamic_rotate %6 by %c15_i32 dim 1 : vector<4x16xf32>, i32 -> vector<4x16xf32>
    %cst_9 = arith.constant 0.000000e+00 : f32
    %35 = vector.shape_cast %33 : vector<1x16xi1> to vector<1x16xi1>
    %36 = vector.broadcast %35 : vector<1x16xi1> to vector<4x16xi1>
    %37 = vector.broadcast %cst_9 : f32 to vector<4x16xf32>
    %38 = arith.select %36, %37, %34 : vector<4x16xi1>, vector<4x16xf32>
    %c0_10 = arith.constant 0 : index
    %c0_11 = arith.constant 0 : index
    %39 = vector.load %arg8[%c0_10, %c0_11] : memref<8x1xf32, #tpu.memory_space<vmem>>, vector<8x1xf32>
    %c0_12 = arith.constant 0 : index
    %c0_13 = arith.constant 0 : index
    %40 = vector.load %arg4[%c0_12, %c0_13] : memref<8x8xf32, #tpu.memory_space<vmem>>, vector<8x8xf32>
    %cst_14 = arith.constant dense<0.000000e+00> : vector<8x16xf32>
    %41 = tpu.matmul %40, %5, %cst_14 {dimension_numbers = #tpu.dot_dimension_numbers<[1], [0], [0], [1], [0, 0, 1, 1], [], []>} : vector<8x8xf32>, vector<8x16xf32>, vector<8x16xf32> -> vector<8x16xf32>
    %c0_15 = arith.constant 0 : index
    %c0_16 = arith.constant 0 : index
    %42 = vector.load %arg6[%c0_15, %c0_16] : memref<8x4xf32, #tpu.memory_space<vmem>>, vector<8x4xf32>
    %cst_17 = arith.constant dense<0.000000e+00> : vector<8x16xf32>
    %43 = tpu.matmul %42, %31, %cst_17 {dimension_numbers = #tpu.dot_dimension_numbers<[1], [0], [0], [1], [0, 0, 1, 1], [], []>} : vector<8x4xf32>, vector<4x16xf32>, vector<8x16xf32> -> vector<8x16xf32>
    %44 = arith.addf %41, %43 : vector<8x16xf32>
    %45 = vector.broadcast %39 : vector<8x1xf32> to vector<8x16xf32>
    %46 = arith.addf %44, %45 : vector<8x16xf32>
    %c0_18 = arith.constant 0 : index
    %c0_19 = arith.constant 0 : index
    %47 = vector.load %arg5[%c0_18, %c0_19] : memref<8x8xf32, #tpu.memory_space<vmem>>, vector<8x8xf32>
    %cst_20 = arith.constant dense<0.000000e+00> : vector<8x16xf32>
    %48 = tpu.matmul %47, %5, %cst_20 {dimension_numbers = #tpu.dot_dimension_numbers<[1], [0], [0], [1], [0, 0, 1, 1], [], []>} : vector<8x8xf32>, vector<8x16xf32>, vector<8x16xf32> -> vector<8x16xf32>
    %c0_21 = arith.constant 0 : index
    %c0_22 = arith.constant 0 : index
    %49 = vector.load %arg7[%c0_21, %c0_22] : memref<8x4xf32, #tpu.memory_space<vmem>>, vector<8x4xf32>
    %cst_23 = arith.constant dense<0.000000e+00> : vector<8x16xf32>
    %50 = tpu.matmul %49, %38, %cst_23 {dimension_numbers = #tpu.dot_dimension_numbers<[1], [0], [0], [1], [0, 0, 1, 1], [], []>} : vector<8x4xf32>, vector<4x16xf32>, vector<8x16xf32> -> vector<8x16xf32>
    %51 = arith.addf %48, %50 : vector<8x16xf32>
    %52 = vector.broadcast %39 : vector<8x1xf32> to vector<8x16xf32>
    %53 = arith.addf %51, %52 : vector<8x16xf32>
    %c0_i32_24 = arith.constant 0 : i32
    %54 = arith.cmpi eq, %arg1, %c0_i32_24 : i32
    %55 = arith.extui %54 : i1 to i32
    %c0_i32_25 = arith.constant 0 : i32
    %56 = arith.cmpi ne, %55, %c0_i32_25 : i32
    scf.if %56 {
      %cst_28 = arith.constant dense<0.000000e+00> : vector<8xf32>
      %60 = vector.multi_reduction <add>, %46, %cst_28 [1] : vector<8x16xf32> to vector<8xf32>
      %61 = vector.shape_cast %60 : vector<8xf32> to vector<8x1xf32>
      %cst_29 = arith.constant dense<0.000000e+00> : vector<8xf32>
      %62 = vector.multi_reduction <add>, %53, %cst_29 [1] : vector<8x16xf32> to vector<8xf32>
      %63 = vector.shape_cast %62 : vector<8xf32> to vector<8x1xf32>
      %64 = arith.addf %61, %63 : vector<8x1xf32>
      %cst_30 = arith.constant 3.125000e-02 : f32
      %65 = vector.broadcast %cst_30 : f32 to vector<8x1xf32>
      %66 = arith.mulf %64, %65 : vector<8x1xf32>
      %67 = vector.broadcast %66 : vector<8x1xf32> to vector<8x16xf32>
      %68 = arith.subf %46, %67 : vector<8x16xf32>
      %69 = vector.broadcast %66 : vector<8x1xf32> to vector<8x16xf32>
      %70 = arith.subf %53, %69 : vector<8x16xf32>
      %71 = arith.mulf %68, %68 : vector<8x16xf32>
      %cst_31 = arith.constant dense<0.000000e+00> : vector<8xf32>
      %72 = vector.multi_reduction <add>, %71, %cst_31 [1] : vector<8x16xf32> to vector<8xf32>
      %73 = vector.shape_cast %72 : vector<8xf32> to vector<8x1xf32>
      %74 = arith.mulf %70, %70 : vector<8x16xf32>
      %cst_32 = arith.constant dense<0.000000e+00> : vector<8xf32>
      %75 = vector.multi_reduction <add>, %74, %cst_32 [1] : vector<8x16xf32> to vector<8xf32>
      %76 = vector.shape_cast %75 : vector<8xf32> to vector<8x1xf32>
      %77 = arith.addf %73, %76 : vector<8x1xf32>
      %c0_33 = arith.constant 0 : index
      %c0_34 = arith.constant 0 : index
      %78 = vector.load %arg12[%c0_33, %c0_34] : memref<8x1xf32, #tpu.memory_space<vmem>>, vector<8x1xf32>
      %79 = arith.addf %78, %64 : vector<8x1xf32>
      %c0_35 = arith.constant 0 : index
      %c0_36 = arith.constant 0 : index
      %80 = vector.load %arg12[%c0_35, %c0_36] : memref<8x1xf32, #tpu.memory_space<vmem>>, vector<8x1xf32>
      tpu.vector_store %arg12[%c0_35, %c0_36], %79 {strides = array<i32>} : memref<8x1xf32, #tpu.memory_space<vmem>>, vector<8x1xf32>,
      %c0_37 = arith.constant 0 : index
      %c0_38 = arith.constant 0 : index
      %81 = vector.load %arg13[%c0_37, %c0_38] : memref<8x1xf32, #tpu.memory_space<vmem>>, vector<8x1xf32>
      %82 = arith.addf %81, %77 : vector<8x1xf32>
      %c0_39 = arith.constant 0 : index
      %c0_40 = arith.constant 0 : index
      %83 = vector.load %arg13[%c0_39, %c0_40] : memref<8x1xf32, #tpu.memory_space<vmem>>, vector<8x1xf32>
      tpu.vector_store %arg13[%c0_39, %c0_40], %82 {strides = array<i32>} : memref<8x1xf32, #tpu.memory_space<vmem>>, vector<8x1xf32>,
      %c0_41 = arith.constant 0 : index
      %c0_42 = arith.constant 0 : index
      %84 = vector.load %arg14[%c0_41, %c0_42] : memref<8x1xf32, #tpu.memory_space<vmem>>, vector<8x1xf32>
      %85 = arith.mulf %66, %66 : vector<8x1xf32>
      %cst_43 = arith.constant 3.200000e+01 : f32
      %86 = vector.broadcast %cst_43 : f32 to vector<8x1xf32>
      %87 = arith.mulf %85, %86 : vector<8x1xf32>
      %88 = arith.addf %84, %87 : vector<8x1xf32>
      %c0_44 = arith.constant 0 : index
      %c0_45 = arith.constant 0 : index
      %89 = vector.load %arg14[%c0_44, %c0_45] : memref<8x1xf32, #tpu.memory_space<vmem>>, vector<8x1xf32>
      tpu.vector_store %arg14[%c0_44, %c0_45], %88 {strides = array<i32>} : memref<8x1xf32, #tpu.memory_space<vmem>>, vector<8x1xf32>,
    } else {
    }
    %c1_i32_26 = arith.constant 1 : i32
    %57 = arith.cmpi eq, %arg1, %c1_i32_26 : i32
    %58 = arith.extui %57 : i1 to i32
    %c0_i32_27 = arith.constant 0 : i32
    %59 = arith.cmpi ne, %58, %c0_i32_27 : i32
    scf.if %59 {
      %c0_28 = arith.constant 0 : index
      %c0_29 = arith.constant 0 : index
      %60 = vector.load %arg12[%c0_28, %c0_29] : memref<8x1xf32, #tpu.memory_space<vmem>>, vector<8x1xf32>
      %cst_30 = arith.constant 3.125000e-02 : f32
      %61 = vector.broadcast %cst_30 : f32 to vector<8x1xf32>
      %62 = arith.mulf %60, %61 : vector<8x1xf32>
      %c0_31 = arith.constant 0 : index
      %c0_32 = arith.constant 0 : index
      %63 = vector.load %arg13[%c0_31, %c0_32] : memref<8x1xf32, #tpu.memory_space<vmem>>, vector<8x1xf32>
      %cst_33 = arith.constant 3.125000e-02 : f32
      %64 = vector.broadcast %cst_33 : f32 to vector<8x1xf32>
      %65 = arith.mulf %63, %64 : vector<8x1xf32>
      %c0_34 = arith.constant 0 : index
      %c0_35 = arith.constant 0 : index
      %66 = vector.load %arg14[%c0_34, %c0_35] : memref<8x1xf32, #tpu.memory_space<vmem>>, vector<8x1xf32>
      %cst_36 = arith.constant 3.125000e-02 : f32
      %67 = vector.broadcast %cst_36 : f32 to vector<8x1xf32>
      %68 = arith.mulf %66, %67 : vector<8x1xf32>
      %69 = arith.mulf %62, %62 : vector<8x1xf32>
      %70 = arith.subf %68, %69 : vector<8x1xf32>
      %cst_37 = arith.constant 0.000000e+00 : f32
      %71 = vector.broadcast %cst_37 : f32 to vector<8x1xf32>
      %72 = arith.maximumf %70, %71 : vector<8x1xf32>
      %73 = arith.addf %65, %72 : vector<8x1xf32>
      %c0_38 = arith.constant 0 : index
      %c0_39 = arith.constant 0 : index
      %74 = vector.load %arg9[%c0_38, %c0_39] : memref<8x1xf32, #tpu.memory_space<vmem>>, vector<8x1xf32>
      %cst_40 = arith.constant 9.99999974E-6 : f32
      %75 = vector.broadcast %cst_40 : f32 to vector<8x1xf32>
      %76 = arith.addf %73, %75 : vector<8x1xf32>
      %77 = math.rsqrt %76 : vector<8x1xf32>
      %78 = arith.mulf %74, %77 : vector<8x1xf32>
      %c0_41 = arith.constant 0 : index
      %c0_42 = arith.constant 0 : index
      %79 = vector.load %arg10[%c0_41, %c0_42] : memref<8x1xf32, #tpu.memory_space<vmem>>, vector<8x1xf32>
      %80 = arith.mulf %78, %62 : vector<8x1xf32>
      %81 = arith.subf %79, %80 : vector<8x1xf32>
      %82 = vector.broadcast %78 : vector<8x1xf32> to vector<8x16xf32>
      %83 = arith.mulf %82, %46 : vector<8x16xf32>
      %84 = vector.broadcast %81 : vector<8x1xf32> to vector<8x16xf32>
      %85 = arith.addf %83, %84 : vector<8x16xf32>
      %cst_43 = arith.constant 0.000000e+00 : f32
      %86 = vector.broadcast %cst_43 : f32 to vector<8x16xf32>
      %87 = arith.maximumf %85, %86 : vector<8x16xf32>
      %88 = vector.broadcast %78 : vector<8x1xf32> to vector<8x16xf32>
      %89 = arith.mulf %88, %53 : vector<8x16xf32>
      %90 = vector.broadcast %81 : vector<8x1xf32> to vector<8x16xf32>
      %91 = arith.addf %89, %90 : vector<8x16xf32>
      %cst_44 = arith.constant 0.000000e+00 : f32
      %92 = vector.broadcast %cst_44 : f32 to vector<8x16xf32>
      %93 = arith.maximumf %91, %92 : vector<8x16xf32>
      %94 = arith.maximumf %87, %93 : vector<8x16xf32>
      %c0_45 = arith.constant 0 : index
      %c0_46 = arith.constant 0 : index
      %95 = vector.load %arg11[%c0_45, %c0_46] : memref<8x16xf32, #tpu.memory_space<vmem>>, vector<8x16xf32>
      tpu.vector_store %arg11[%c0_45, %c0_46], %94 {strides = array<i32>} : memref<8x16xf32, #tpu.memory_space<vmem>>, vector<8x16xf32>,
    } else {
    }
    return
  }
  func.func @transform_0(%arg0: i32, %arg1: i32, %arg2: i32) -> (i32, i32) {
    %c0_i32 = arith.constant 0 : i32
    %c0_i32_0 = arith.constant 0 : i32
    return %c0_i32, %arg2 : i32, i32
  }
  func.func @transform_1(%arg0: i32, %arg1: i32, %arg2: i32) -> (i32, i32) {
    %c0_i32 = arith.constant 0 : i32
    %c0_i32_0 = arith.constant 0 : i32
    return %arg0, %c0_i32 : i32, i32
  }
  func.func @transform_2(%arg0: i32, %arg1: i32, %arg2: i32) -> (i32, i32) {
    %c0_i32 = arith.constant 0 : i32
    %c0_i32_0 = arith.constant 0 : i32
    return %arg0, %c0_i32 : i32, i32
  }
  func.func @transform_3(%arg0: i32, %arg1: i32, %arg2: i32) -> (i32, i32) {
    %c0_i32 = arith.constant 0 : i32
    %c0_i32_0 = arith.constant 0 : i32
    return %arg0, %c0_i32 : i32, i32
  }
  func.func @transform_4(%arg0: i32, %arg1: i32, %arg2: i32) -> (i32, i32) {
    %c0_i32 = arith.constant 0 : i32
    %c0_i32_0 = arith.constant 0 : i32
    return %arg0, %c0_i32 : i32, i32
  }
  func.func @transform_5(%arg0: i32, %arg1: i32, %arg2: i32) -> (i32, i32) {
    %c0_i32 = arith.constant 0 : i32
    %c0_i32_0 = arith.constant 0 : i32
    return %arg0, %c0_i32 : i32, i32
  }
  func.func @transform_6(%arg0: i32, %arg1: i32, %arg2: i32) -> (i32, i32) {
    %c0_i32 = arith.constant 0 : i32
    %c0_i32_0 = arith.constant 0 : i32
    return %arg0, %c0_i32 : i32, i32
  }
  func.func @transform_7(%arg0: i32, %arg1: i32, %arg2: i32) -> (i32, i32) {
    %c0_i32 = arith.constant 0 : i32
    %c0_i32_0 = arith.constant 0 : i32
    return %arg0, %c0_i32 : i32, i32
  }
  func.func @transform_8(%arg0: i32, %arg1: i32, %arg2: i32) -> (i32, i32) {
    %c0_i32 = arith.constant 0 : i32
    return %arg0, %arg2 : i32, i32
  }
}

</mosaic_0001>

<llo_original>
// kernel: tpu_custom_call.1
$region0: #{tpu_custom_call.1}
  #allocation0 [shape = 'u32[]', space=smem, size = 0x4, offset = 0x4, fixed_abs, tag = 'smem constant byte address 0x4 - core index']
  #allocation1 [shape = 'u32[144,128]{1,0:T(1,128)}', space=vmem, size = 0x12000, scoped, tag = 'internal scratch']
  #allocation2 [shape = 'f32[8,1]{1,0:T(8,128)}', space=vmem, size = 0x1000, scoped, tag = 'scratch operand']
  #allocation3 [shape = 'f32[8,1]{1,0:T(8,128)}', space=vmem, size = 0x1000, scoped, tag = 'scratch operand']
  #allocation4 [shape = 'f32[8,1]{1,0:T(8,128)}', space=vmem, size = 0x1000, scoped, tag = 'scratch operand']
  %s0 = inlined_call_operand.vmem [shape: f32[8,16], index: 0, kind: input, shape index: {}]
  %s1 = inlined_call_operand.vmem [shape: f32[8,8], index: 1, kind: input, shape index: {}]
  %s2 = inlined_call_operand.vmem [shape: f32[8,8], index: 2, kind: input, shape index: {}]
  %s3 = inlined_call_operand.vmem [shape: f32[8,4], index: 3, kind: input, shape index: {}]
  %s4 = inlined_call_operand.vmem [shape: f32[8,4], index: 4, kind: input, shape index: {}]
  %s5 = inlined_call_operand.vmem [shape: f32[8,1], index: 5, kind: input, shape index: {}]
  %s6 = inlined_call_operand.vmem [shape: f32[8,1], index: 6, kind: input, shape index: {}]
  %s7 = inlined_call_operand.vmem [shape: f32[8,1], index: 7, kind: input, shape index: {}]
  %s8 = inlined_call_operand.hbm [shape: f32[8,16], index: 8, kind: output, shape index: {}]
  %s9 = sld [smem:[#allocation0]]
  $region77: #{tpu_custom_call.1} parent=0
    _
  %s11 = ssub.s32 1, %s9
  %s12 = scalar_select 0, %s11, %s9
  $region1: #{tpu_custom_call.1} parent=0
    #allocation5 [shape = 'u8[4096]{0}', space=vmem, size = 0x1000, scoped, tag = 'output window, operand 0, single buffered']
    #allocation6 [shape = 's32[2]{0}', space=sflag, size = 0x8, scoped, tag = 'scoped memory for tpu_custom_call.1']
    %13 = vsyncpa [#allocation6], 0
    loop: start=0, step=1, limit=4
    $region2: #{tpu_custom_call.1} parent=1 // loop_pre_header
      _
    $region3: #{tpu_custom_call.1} parent=1 // loop_header
      %s15 = sphi 0, %s19
      %p16 = scmp.ge.s32.totalorder %s15, 4
      %s22 = sphi 0, %s41
      %s23 = sphi 0, %s37
      %s24 = sphi 0, %s33
      %s25 = sphi 0, %s22
      %s26 = sphi 0, %s23
      %s27 = sphi 0, %s24
      %s28 = sphi 0, %s25
      %s29 = sphi 0, %s26
      %s30 = sphi 0, %s27
      %s44 = sphi 0, %s46
      %s47 = sphi 0, %s44
      %s48 = sphi 0, %s47
      %s64 = sphi 0, %s48
      %s70 = sphi 0, %s72
      %s73 = sphi 0, %s70
      %s74 = sphi 0, %s73
      %s90 = sphi 0, %s74
      %s96 = sphi 0, %s98
      %s99 = sphi 0, %s96
      %s100 = sphi 0, %s99
      %s116 = sphi 0, %s100
      %s122 = sphi 0, %s124
      %s125 = sphi 0, %s122
      %s126 = sphi 0, %s125
      %s142 = sphi 0, %s126
      %s148 = sphi 0, %s150
      %s151 = sphi 0, %s148
      %s152 = sphi 0, %s151
      %s168 = sphi 0, %s152
      %s174 = sphi 0, %s176
      %s177 = sphi 0, %s174
      %s178 = sphi 0, %s177
      %s194 = sphi 0, %s178
      %s200 = sphi 0, %s202
      %s203 = sphi 0, %s200
      %s204 = sphi 0, %s203
      %s220 = sphi 0, %s204
      %s226 = sphi 0, %s228
      %s229 = sphi 0, %s226
      %s230 = sphi 0, %s229
      %s246 = sphi 0, %s230
      %s254 = sphi 0, %s256
      %s257 = sphi 0, %s254
      %s258 = sphi 0, %s257
      %s274 = sphi 0, %s258
    $region4: #{tpu_custom_call.1} parent=1 // loop_header_branch
      %18 = sbr.rel (%p16) target = $region8
    $region5: #{tpu_custom_call.1} parent=1 // loop_body
      %s20 = ssub.s32 %s15, 1
      %s21 = ssub.s32 %s15, 2
      %s31 = sadd.s32 1, %s24
      %p32 = scmp.ge.s32.totalorder %s31, 1
      %s33 = scalar_select %p32, 0, %s31
      %s34 = sadd.s32 1, %s23
      %s35 = scalar_select %p32, %s34, %s23
      %p36 = scmp.ge.s32.totalorder %s35, 2
      %s37 = scalar_select %p36, 0, %s35
      %s38 = sadd.s32 1, %s22
      %s39 = scalar_select %p36, %s38, %s22
      %p40 = scmp.ge.s32.totalorder %s39, 1
      %s41 = scalar_select %p40, 0, %s39
      %s42 = ssub.s32 %s24, %s33
      %p43 = scmp.eq.s32.totalorder %s42, 0
      %s45 = sadd.s32 %s44, 1
      %s46 = scalar_select %p43, %s44, %s45
      %p49 = pneg %p43
      %p50 = scmp.eq.s32.totalorder %s15, 1
      %p51 = por %p49, %p50
      %p52 = scmp.ne.s32.totalorder %s44, %s47
      %p53 = scmp.eq.s32.totalorder %s15, 0
      %p54 = por %p52, %p53
      %p55 = scmp.ne.s32.totalorder %s44, %s47
      %p56 = scmp.eq.s32.totalorder %s20, 1
      %p57 = por %p55, %p56
      %p58 = scmp.ne.s32.totalorder %s47, %s48
      %p59 = scmp.eq.s32.totalorder %s20, 0
      %p60 = por %p58, %p59
      %p61 = scmp.ne.s32.totalorder %s47, %s48
      %p62 = scmp.eq.s32.totalorder %s21, 1
      %p63 = por %p61, %p62
      %p65 = scmp.ne.s32.totalorder %s48, %s64
      %p66 = scmp.eq.s32.totalorder %s21, 0
      %p67 = por %p65, %p66
      %s68 = ssub.s32 %s22, %s41
      %p69 = scmp.eq.s32.totalorder %s68, 0
      %s71 = sadd.s32 %s70, 1
      %s72 = scalar_select %p69, %s70, %s71
      %p75 = pneg %p69
      %p76 = scmp.eq.s32.totalorder %s15, 1
      %p77 = por %p75, %p76
      %p78 = scmp.ne.s32.totalorder %s70, %s73
      %p79 = scmp.eq.s32.totalorder %s15, 0
      %p80 = por %p78, %p79
      %p81 = scmp.ne.s32.totalorder %s70, %s73
      %p82 = scmp.eq.s32.totalorder %s20, 1
      %p83 = por %p81, %p82
      %p84 = scmp.ne.s32.totalorder %s73, %s74
      %p85 = scmp.eq.s32.totalorder %s20, 0
      %p86 = por %p84, %p85
      %p87 = scmp.ne.s32.totalorder %s73, %s74
      %p88 = scmp.eq.s32.totalorder %s21, 1
      %p89 = por %p87, %p88
      %p91 = scmp.ne.s32.totalorder %s74, %s90
      %p92 = scmp.eq.s32.totalorder %s21, 0
      %p93 = por %p91, %p92
      %s94 = ssub.s32 %s22, %s41
      %p95 = scmp.eq.s32.totalorder %s94, 0
      %s97 = sadd.s32 %s96, 1
      %s98 = scalar_select %p95, %s96, %s97
      %p101 = pneg %p95
      %p102 = scmp.eq.s32.totalorder %s15, 1
      %p103 = por %p101, %p102
      %p104 = scmp.ne.s32.totalorder %s96, %s99
      %p105 = scmp.eq.s32.totalorder %s15, 0
      %p106 = por %p104, %p105
      %p107 = scmp.ne.s32.totalorder %s96, %s99
      %p108 = scmp.eq.s32.totalorder %s20, 1
      %p109 = por %p107, %p108
      %p110 = scmp.ne.s32.totalorder %s99, %s100
      %p111 = scmp.eq.s32.totalorder %s20, 0
      %p112 = por %p110, %p111
      %p113 = scmp.ne.s32.totalorder %s99, %s100
      %p114 = scmp.eq.s32.totalorder %s21, 1
      %p115 = por %p113, %p114
      %p117 = scmp.ne.s32.totalorder %s100, %s116
      %p118 = scmp.eq.s32.totalorder %s21, 0
      %p119 = por %p117, %p118
      %s120 = ssub.s32 %s22, %s41
      %p121 = scmp.eq.s32.totalorder %s120, 0
      %s123 = sadd.s32 %s122, 1
      %s124 = scalar_select %p121, %s122, %s123
      %p127 = pneg %p121
      %p128 = scmp.eq.s32.totalorder %s15, 1
      %p129 = por %p127, %p128
      %p130 = scmp.ne.s32.totalorder %s122, %s125
      %p131 = scmp.eq.s32.totalorder %s15, 0
      %p132 = por %p130, %p131
      %p133 = scmp.ne.s32.totalorder %s122, %s125
      %p134 = scmp.eq.s32.totalorder %s20, 1
      %p135 = por %p133, %p134
      %p136 = scmp.ne.s32.totalorder %s125, %s126
      %p137 = scmp.eq.s32.totalorder %s20, 0
      %p138 = por %p136, %p137
      %p139 = scmp.ne.s32.totalorder %s125, %s126
      %p140 = scmp.eq.s32.totalorder %s21, 1
      %p141 = por %p139, %p140
      %p143 = scmp.ne.s32.totalorder %s126, %s142
      %p144 = scmp.eq.s32.totalorder %s21, 0
      %p145 = por %p143, %p144
      %s146 = ssub.s32 %s22, %s41
      %p147 = scmp.eq.s32.totalorder %s146, 0
      %s149 = sadd.s32 %s148, 1
      %s150 = scalar_select %p147, %s148, %s149
      %p153 = pneg %p147
      %p154 = scmp.eq.s32.totalorder %s15, 1
      %p155 = por %p153, %p154
      %p156 = scmp.ne.s32.totalorder %s148, %s151
      %p157 = scmp.eq.s32.totalorder %s15, 0
      %p158 = por %p156, %p157
      %p159 = scmp.ne.s32.totalorder %s148, %s151
      %p160 = scmp.eq.s32.totalorder %s20, 1
      %p161 = por %p159, %p160
      %p162 = scmp.ne.s32.totalorder %s151, %s152
      %p163 = scmp.eq.s32.totalorder %s20, 0
      %p164 = por %p162, %p163
      %p165 = scmp.ne.s32.totalorder %s151, %s152
      %p166 = scmp.eq.s32.totalorder %s21, 1
      %p167 = por %p165, %p166
      %p169 = scmp.ne.s32.totalorder %s152, %s168
      %p170 = scmp.eq.s32.totalorder %s21, 0
      %p171 = por %p169, %p170
      %s172 = ssub.s32 %s22, %s41
      %p173 = scmp.eq.s32.totalorder %s172, 0
      %s175 = sadd.s32 %s174, 1
      %s176 = scalar_select %p173, %s174, %s175
      %p179 = pneg %p173
      %p180 = scmp.eq.s32.totalorder %s15, 1
      %p181 = por %p179, %p180
      %p182 = scmp.ne.s32.totalorder %s174, %s177
      %p183 = scmp.eq.s32.totalorder %s15, 0
      %p184 = por %p182, %p183
      %p185 = scmp.ne.s32.totalorder %s174, %s177
      %p186 = scmp.eq.s32.totalorder %s20, 1
      %p187 = por %p185, %p186
      %p188 = scmp.ne.s32.totalorder %s177, %s178
      %p189 = scmp.eq.s32.totalorder %s20, 0
      %p190 = por %p188, %p189
      %p191 = scmp.ne.s32.totalorder %s177, %s178
      %p192 = scmp.eq.s32.totalorder %s21, 1
      %p193 = por %p191, %p192
      %p195 = scmp.ne.s32.totalorder %s178, %s194
      %p196 = scmp.eq.s32.totalorder %s21, 0
      %p197 = por %p195, %p196
      %s198 = ssub.s32 %s22, %s41
      %p199 = scmp.eq.s32.totalorder %s198, 0
      %s201 = sadd.s32 %s200, 1
      %s202 = scalar_select %p199, %s200, %s201
      %p205 = pneg %p199
      %p206 = scmp.eq.s32.totalorder %s15, 1
      %p207 = por %p205, %p206
      %p208 = scmp.ne.s32.totalorder %s200, %s203
      %p209 = scmp.eq.s32.totalorder %s15, 0
      %p210 = por %p208, %p209
      %p211 = scmp.ne.s32.totalorder %s200, %s203
      %p212 = scmp.eq.s32.totalorder %s20, 1
      %p213 = por %p211, %p212
      %p214 = scmp.ne.s32.totalorder %s203, %s204
      %p215 = scmp.eq.s32.totalorder %s20, 0
      %p216 = por %p214, %p215
      %p217 = scmp.ne.s32.totalorder %s203, %s204
      %p218 = scmp.eq.s32.totalorder %s21, 1
      %p219 = por %p217, %p218
      %p221 = scmp.ne.s32.totalorder %s204, %s220
      %p222 = scmp.eq.s32.totalorder %s21, 0
      %p223 = por %p221, %p222
      %s224 = ssub.s32 %s22, %s41
      %p225 = scmp.eq.s32.totalorder %s224, 0
      %s227 = sadd.s32 %s226, 1
      %s228 = scalar_select %p225, %s226, %s227
      %p231 = pneg %p225
      %p232 = scmp.eq.s32.totalorder %s15, 1
      %p233 = por %p231, %p232
      %p234 = scmp.ne.s32.totalorder %s226, %s229
      %p235 = scmp.eq.s32.totalorder %s15, 0
      %p236 = por %p234, %p235
      %p237 = scmp.ne.s32.totalorder %s226, %s229
      %p238 = scmp.eq.s32.totalorder %s20, 1
      %p239 = por %p237, %p238
      %p240 = scmp.ne.s32.totalorder %s229, %s230
      %p241 = scmp.eq.s32.totalorder %s20, 0
      %p242 = por %p240, %p241
      %p243 = scmp.ne.s32.totalorder %s229, %s230
      %p244 = scmp.eq.s32.totalorder %s21, 1
      %p245 = por %p243, %p244
      %p247 = scmp.ne.s32.totalorder %s230, %s246
      %p248 = scmp.eq.s32.totalorder %s21, 0
      %p249 = por %p247, %p248
      %s250 = ssub.s32 %s22, %s41
      %s251 = ssub.s32 %s24, %s33
      %s252 = sor.u32 %s250, %s251
      %p253 = scmp.eq.s32.totalorder %s252, 0
      %s255 = sadd.s32 %s254, 1
      %s256 = scalar_select %p253, %s254, %s255
      %p259 = pneg %p253
      %p260 = scmp.eq.s32.totalorder %s15, 1
      %p261 = por %p259, %p260
      %p262 = scmp.ne.s32.totalorder %s254, %s257
      %p263 = scmp.eq.s32.totalorder %s15, 0
      %p264 = por %p262, %p263
      %p265 = scmp.ne.s32.totalorder %s254, %s257
      %p266 = scmp.eq.s32.totalorder %s20, 1
      %p267 = por %p265, %p266
      %p268 = scmp.ne.s32.totalorder %s257, %s258
      %p269 = scmp.eq.s32.totalorder %s20, 0
      %p270 = por %p268, %p269
      %p271 = scmp.ne.s32.totalorder %s257, %s258
      %p272 = scmp.eq.s32.totalorder %s21, 1
      %p273 = por %p271, %p272
      %p275 = scmp.ne.s32.totalorder %s258, %s274
      %p276 = scmp.eq.s32.totalorder %s21, 0
      %p277 = por %p275, %p276
      %p278 = scmp.le.s32.totalorder 1, %s15
      %p279 = scmp.lt.s32.totalorder %s15, 3
      %p280 = pnand %p278, %p279
      %p281 = pneg %p280
      // Predicated region
      $region9: #{tpu_custom_call.1} parent=5 // pred_check
        _
      $region10: #{tpu_custom_call.1} parent=5 // pred_check_branch
        %283 = sbr.rel (%p280) target = $region12
      $region11: #{tpu_custom_call.1} parent=5 // pred_region
        %s284 = ssub.s32 %s15, 1
        // Predicated region
        $region13: #{tpu_custom_call.1} parent=11 // pred_check
          %p285 = pneg %p60
        $region14: #{tpu_custom_call.1} parent=11 // pred_check_branch
          %287 = sbr.rel (%p285) target = $region16
        $region15: #{tpu_custom_call.1} parent=11 // pred_region
          %p288 = scmp.lt.s32.totalorder %s27, 0
          %s289 = scalar_select %p288, %s27, 0
          %s290 = smul.addr %s289, 8
          %s291 = scalar_lea.vmem %s0, %s290
        $region16: #{tpu_custom_call.1} parent=11 // pred_fallthru
          _
        // Predicated region
        $region17: #{tpu_custom_call.1} parent=11 // pred_check
          %p292 = pneg %p86
        $region18: #{tpu_custom_call.1} parent=11 // pred_check_branch
          %294 = sbr.rel (%p292) target = $region20
        $region19: #{tpu_custom_call.1} parent=11 // pred_region
          %p295 = scmp.lt.s32.totalorder %s25, 0
          %s296 = scalar_select %p295, %s25, 0
          %s297 = smul.addr %s296, 8
          %s298 = scalar_lea.vmem %s1, %s297
        $region20: #{tpu_custom_call.1} parent=11 // pred_fallthru
          _
        // Predicated region
        $region21: #{tpu_custom_call.1} parent=11 // pred_check
          %p299 = pneg %p112
        $region22: #{tpu_custom_call.1} parent=11 // pred_check_branch
          %301 = sbr.rel (%p299) target = $region24
        $region23: #{tpu_custom_call.1} parent=11 // pred_region
          %p302 = scmp.lt.s32.totalorder %s25, 0
          %s303 = scalar_select %p302, %s25, 0
          %s304 = smul.addr %s303, 8
          %s305 = scalar_lea.vmem %s2, %s304
        $region24: #{tpu_custom_call.1} parent=11 // pred_fallthru
          _
        // Predicated region
        $region25: #{tpu_custom_call.1} parent=11 // pred_check
          %p306 = pneg %p138
        $region26: #{tpu_custom_call.1} parent=11 // pred_check_branch
          %308 = sbr.rel (%p306) target = $region28
        $region27: #{tpu_custom_call.1} parent=11 // pred_region
          %p309 = scmp.lt.s32.totalorder %s25, 0
          %s310 = scalar_select %p309, %s25, 0
          %s311 = smul.addr %s310, 8
          %s312 = scalar_lea.vmem %s3, %s311
        $region28: #{tpu_custom_call.1} parent=11 // pred_fallthru
          _
        // Predicated region
        $region29: #{tpu_custom_call.1} parent=11 // pred_check
          %p313 = pneg %p164
        $region30: #{tpu_custom_call.1} parent=11 // pred_check_branch
          %315 = sbr.rel (%p313) target = $region32
        $region31: #{tpu_custom_call.1} parent=11 // pred_region
          %p316 = scmp.lt.s32.totalorder %s25, 0
          %s317 = scalar_select %p316, %s25, 0
          %s318 = smul.addr %s317, 8
          %s319 = scalar_lea.vmem %s4, %s318
        $region32: #{tpu_custom_call.1} parent=11 // pred_fallthru
          _
        // Predicated region
        $region33: #{tpu_custom_call.1} parent=11 // pred_check
          %p320 = pneg %p190
        $region34: #{tpu_custom_call.1} parent=11 // pred_check_branch
          %322 = sbr.rel (%p320) target = $region36
        $region35: #{tpu_custom_call.1} parent=11 // pred_region
          %p323 = scmp.lt.s32.totalorder %s25, 0
          %s324 = scalar_select %p323, %s25, 0
          %s325 = smul.addr %s324, 8
          %s326 = scalar_lea.vmem %s5, %s325
        $region36: #{tpu_custom_call.1} parent=11 // pred_fallthru
          _
        // Predicated region
        $region37: #{tpu_custom_call.1} parent=11 // pred_check
          %p327 = pneg %p216
        $region38: #{tpu_custom_call.1} parent=11 // pred_check_branch
          %329 = sbr.rel (%p327) target = $region40
        $region39: #{tpu_custom_call.1} parent=11 // pred_region
          %p330 = scmp.lt.s32.totalorder %s25, 0
          %s331 = scalar_select %p330, %s25, 0
          %s332 = smul.addr %s331, 8
          %s333 = scalar_lea.vmem %s6, %s332
        $region40: #{tpu_custom_call.1} parent=11 // pred_fallthru
          _
        // Predicated region
        $region41: #{tpu_custom_call.1} parent=11 // pred_check
          %p334 = pneg %p242
        $region42: #{tpu_custom_call.1} parent=11 // pred_check_branch
          %336 = sbr.rel (%p334) target = $region44
        $region43: #{tpu_custom_call.1} parent=11 // pred_region
          %p337 = scmp.lt.s32.totalorder %s25, 0
          %s338 = scalar_select %p337, %s25, 0
          %s339 = smul.addr %s338, 8
          %s340 = scalar_lea.vmem %s7, %s339
        $region44: #{tpu_custom_call.1} parent=11 // pred_fallthru
          _
      $region12: #{tpu_custom_call.1} parent=5 // pred_fallthru
        _
      %p341 = scmp.lt.s32.totalorder %s15, 2
      // Predicated region
      $region45: #{tpu_custom_call.1} parent=5 // pred_check
        %p342 = pneg %p341
      $region46: #{tpu_custom_call.1} parent=5 // pred_check_branch
        %344 = sbr.rel (%p342) target = $region48
      $region47: #{tpu_custom_call.1} parent=5 // pred_region
        _
      $region48: #{tpu_custom_call.1} parent=5 // pred_fallthru
        _
      %p345 = scmp.le.s32.totalorder 1, %s15
      %p346 = scmp.lt.s32.totalorder %s15, 3
      %p347 = pnand %p345, %p346
      %p348 = pneg %p347
      // Predicated region
      $region49: #{tpu_custom_call.1} parent=5 // pred_check
        _
      $region50: #{tpu_custom_call.1} parent=5 // pred_check_branch
        %350 = sbr.rel (%p347) target = $region52
      $region51: #{tpu_custom_call.1} parent=5 // pred_region
        %s351 = ssub.s32 %s15, 1
        %p352 = scmp.lt.s32.totalorder %s27, 0
        %s353 = scalar_select %p352, %s27, 0
        %s354 = smul.addr %s353, 8
        %s355 = scalar_lea.vmem %s0, %s354
        %p356 = pneg %p60
        %p357 = pneg %p57
        %p358 = scmp.lt.s32.totalorder %s25, 0
        %s359 = scalar_select %p358, %s25, 0
        %s360 = smul.addr %s359, 8
        %s361 = scalar_lea.vmem %s1, %s360
        %p362 = pneg %p86
        %p363 = pneg %p83
        %p364 = scmp.lt.s32.totalorder %s25, 0
        %s365 = scalar_select %p364, %s25, 0
        %s366 = smul.addr %s365, 8
        %s367 = scalar_lea.vmem %s2, %s366
        %p368 = pneg %p112
        %p369 = pneg %p109
        %p370 = scmp.lt.s32.totalorder %s25, 0
        %s371 = scalar_select %p370, %s25, 0
        %s372 = smul.addr %s371, 8
        %s373 = scalar_lea.vmem %s3, %s372
        %p374 = pneg %p138
        %p375 = pneg %p135
        %p376 = scmp.lt.s32.totalorder %s25, 0
        %s377 = scalar_select %p376, %s25, 0
        %s378 = smul.addr %s377, 8
        %s379 = scalar_lea.vmem %s4, %s378
        %p380 = pneg %p164
        %p381 = pneg %p161
        %p382 = scmp.lt.s32.totalorder %s25, 0
        %s383 = scalar_select %p382, %s25, 0
        %s384 = smul.addr %s383, 8
        %s385 = scalar_lea.vmem %s5, %s384
        %p386 = pneg %p190
        %p387 = pneg %p187
        %p388 = scmp.lt.s32.totalorder %s25, 0
        %s389 = scalar_select %p388, %s25, 0
        %s390 = smul.addr %s389, 8
        %s391 = scalar_lea.vmem %s6, %s390
        %p392 = pneg %p216
        %p393 = pneg %p213
        %p394 = scmp.lt.s32.totalorder %s25, 0
        %s395 = scalar_select %p394, %s25, 0
        %s396 = smul.addr %s395, 8
        %s397 = scalar_lea.vmem %s7, %s396
        %p398 = pneg %p242
        %p399 = pneg %p239
        %p400 = pneg %p270
        %p401 = pneg %p267
        %p402 = scmp.lt.s32.totalorder %s27, 0
        %s403 = scalar_select %p402, %s27, 0
        %s404 = smul.addr %s403, 8
        %s405 = scalar_lea.vmem %s0, %s404
        %p406 = scmp.lt.s32.totalorder %s25, 0
        %s407 = scalar_select %p406, %s25, 0
        %s408 = smul.addr %s407, 8
        %s409 = scalar_lea.vmem %s1, %s408
        %p410 = scmp.lt.s32.totalorder %s25, 0
        %s411 = scalar_select %p410, %s25, 0
        %s412 = smul.addr %s411, 8
        %s413 = scalar_lea.vmem %s2, %s412
        %p414 = scmp.lt.s32.totalorder %s25, 0
        %s415 = scalar_select %p414, %s25, 0
        %s416 = smul.addr %s415, 8
        %s417 = scalar_lea.vmem %s3, %s416
        %p418 = scmp.lt.s32.totalorder %s25, 0
        %s419 = scalar_select %p418, %s25, 0
        %s420 = smul.addr %s419, 8
        %s421 = scalar_lea.vmem %s4, %s420
        %p422 = scmp.lt.s32.totalorder %s25, 0
        %s423 = scalar_select %p422, %s25, 0
        %s424 = smul.addr %s423, 8
        %s425 = scalar_lea.vmem %s5, %s424
        %p426 = scmp.lt.s32.totalorder %s25, 0
        %s427 = scalar_select %p426, %s25, 0
        %s428 = smul.addr %s427, 8
        %s429 = scalar_lea.vmem %s6, %s428
        %p430 = scmp.lt.s32.totalorder %s25, 0
        %s431 = scalar_select %p430, %s25, 0
        %s432 = smul.addr %s431, 8
        %s433 = scalar_lea.vmem %s7, %s432
        %p434 = scmp.eq.s32.totalorder %s26, 0
        %p435 = scmp.eq.s32.totalorder %s27, 0
        %p436 = pnand %p434, %p435
        %p437 = pneg %p436
        // Predicated region
        $region53: #{tpu_custom_call.1} parent=51 // pred_check
          _
        $region54: #{tpu_custom_call.1} parent=51 // pred_check_branch
          %439 = sbr.rel (%p436) target = $region56
        $region55: #{tpu_custom_call.1} parent=51 // pred_region
          %vm440 = vcmask 7168
          %441 = vst.msk [vmem:[#allocation2] sm:$0xff] %vm440, 0.0
          %442 = vst.msk [vmem:[#allocation3] sm:$0xff] %vm440, 0.0
          %443 = vst.msk [vmem:[#allocation4] sm:$0xff] %vm440, 0.0
        $region56: #{tpu_custom_call.1} parent=51 // pred_fallthru
          _
        %v444 = vld [vmem:[%s405] sm:$0xff]
        %v445 = vlaneseq
        %v446 = vand.u32 %v445, 127
        %vm447 = vcmp.lt.s32.totalorder %v446, 0
        %v448 = vsub.s32 0, %v446
        %v449 = vsel %vm447, %v448, %v446
        %v450 = vshrl.u32 %v449, 3
        %v451 = vand.u32 %v449, 7
        %v452 = vsub.s32 0, %v451
        %v453 = vsel %vm447, %v452, %v451
        %vm454 = vcmp.ne.s32.totalorder %v453, 0
        %vm455 = vcmp.lt.s32.totalorder %v453, 0
        %vm456 = vmand %vm455, %vm454
        %v457 = vadd.s32 %v453, 8
        %v458 = vsel %vm456, %v457, %v453
        %vm459 = vcmp.eq.s32.totalorder %v458, 0
        %v461 = vrot.slane %v444, 4
        %vm463 = vcmask 1047680
        %464 = vrot.lane.b32.xlu0 %v461, 16
        %v465 = vpop.permute.xlu0 %464
        %v466 = vsel %vm463, %v465, %v461
        %467 = vrot.lane.b32.xlu0 %v466, 16
        %v468 = vpop.permute.xlu0 %467
        %v469 = vsel %vm463, %v468, %v461
        %v470 = vsel %vm459, 1, 0
        %vm471 = vcmp.eq.s32.totalorder %v470, 1
        %473 = vrot.lane.b32.xlu0 %v469, 113
        %v474 = vpop.permute.xlu0 %473
        %v476 = vsel %vm471, 0.0, %v474
        %vm477 = vcmp.eq.s32.totalorder %v458, 7
        %478 = vrot.lane.b32.xlu0 %v444, 16
        %v479 = vpop.permute.xlu0 %478
        %v480 = vsel %vm463, %v479, %v444
        %481 = vrot.lane.b32.xlu0 %v480, 16
        %v482 = vpop.permute.xlu0 %481
        %v483 = vsel %vm463, %v482, %v444
        %v484 = vsel %vm477, 1, 0
        %vm485 = vcmp.eq.s32.totalorder %v484, 1
        %487 = vrot.lane.b32.xlu0 %v483, 127
        %v488 = vpop.permute.xlu0 %487
        %v490 = vsel %vm485, 0.0, %v488
        %v491 = vld [vmem:[%s425] sm:$0xff]
        %v492 = vld [vmem:[%s409] sm:$0xff]
        %v493 = vld [vmem:[%s417] sm:$0xff]
        %vm494 = vcmask 31744
        %v496 = vsel %vm494, %v493, 0
        %vm498 = vcmask 1043456
        %v500 = vsel %vm498, %v476, 0
        %502 = vmatprep.subr.mxu0 0.0
        %503 = vmatpush1.msra.mxu0 %v500
        %504 = vmatprep.subr.mxu0 0.0
        %505 = vmatpush1.msra.mxu0 0.0
        %506 = vmatprep.subr.mxu0 0.0
        %507 = vmatpush1.msra.mxu0 0.0
        %508 = vmatprep.subr.mxu0 0.0
        %509 = vmatpush1.msra.mxu0 0.0
        %510 = vmatprep.subr.mxu0 0.0
        %511 = vmatpush1.msra.mxu0 0.0
        %512 = vmatprep.subr.mxu0 0.0
        %513 = vmatpush1.msra.mxu0 0.0
        %514 = vmatprep.subr.mxu0 0.0
        %515 = vmatpush1.msra.mxu0 0.0
        %516 = vmatprep.subr.mxu0 0.0
        %517 = vmatpush1.msra.mxu0 0.0
        %518 = vmatprep.subr.mxu0 0.0
        %519 = vmatpush1.msra.mxu0 0.0
        %520 = vmatprep.subr.mxu0 0.0
        %521 = vmatpush1.msra.mxu0 0.0
        %522 = vmatprep.subr.mxu0 0.0
        %523 = vmatpush1.msra.mxu0 0.0
        %524 = vmatprep.subr.mxu0 0.0
        %525 = vmatpush1.msra.mxu0 0.0
        %526 = vmatprep.subr.mxu0 0.0
        %527 = vmatpush1.msra.mxu0 0.0
        %528 = vmatprep.subr.mxu0 0.0
        %529 = vmatpush1.msra.mxu0 0.0
        %530 = vmatprep.subr.mxu0 0.0
        %531 = vmatpush1.msra.mxu0 0.0
        %532 = vmatprep.subr.mxu0 0.0
        %533 = vmatpush1.msra.mxu0 0.0
        %534 = vmatprep.subr.mxu0 0.0
        %535 = vmatpush1.msra.mxu0 0.0
        %536 = vmatprep.subr.mxu0 0.0
        %537 = vmatpush1.msra.mxu0 0.0
        %538 = vmatprep.subr.mxu0 0.0
        %539 = vmatpush1.msra.mxu0 0.0
        %540 = vmatprep.subr.mxu0 0.0
        %541 = vmatpush1.msra.mxu0 0.0
        %542 = vmatprep.subr.mxu0 0.0
        %543 = vmatpush1.msra.mxu0 0.0
        %544 = vmatprep.subr.mxu0 0.0
        %545 = vmatpush1.msra.mxu0 0.0
        %546 = vmatprep.subr.mxu0 0.0
        %547 = vmatpush1.msra.mxu0 0.0
        %548 = vmatprep.subr.mxu0 0.0
        %549 = vmatpush1.msra.mxu0 0.0
        %550 = vmatprep.subr.mxu0 0.0
        %551 = vmatpush1.msra.mxu0 0.0
        %552 = vmatprep.subr.mxu0 0.0
        %553 = vmatpush1.msra.mxu0 0.0
        %554 = vmatprep.subr.mxu0 0.0
        %555 = vmatpush1.msra.mxu0 0.0
        %556 = vmatprep.subr.mxu0 0.0
        %557 = vmatpush1.msra.mxu0 0.0
        %558 = vmatprep.subr.mxu0 0.0
        %559 = vmatpush1.msra.mxu0 0.0
        %560 = vmatprep.subr.mxu0 0.0
        %561 = vmatpush1.msra.mxu0 0.0
        %562 = vmatprep.subr.mxu0 0.0
        %563 = vmatpush1.msra.mxu0 0.0
        %564 = vmatprep.subr.mxu0 0.0
        %565 = vmatpush1.msra.mxu0 0.0
        %566 = vmatprep.mubr.f32.mxu0 0.0
        %567 = vmatmul.mubr.f32.gmra.mrb[0].mxu0 %v496
        %v568 = vpop.f32.mrb[0].mxu0
        %v569 = vadd.f32 0.0, %v568
        %v570 = vpop.f32.mrb[0].mxu0
        %571 = vdwg.mxu0
        %vm572 = vcmask 64512
        %v574 = vsel %vm572, %v492, 0
        %576 = vmatprep.subr.mxu0 0.0
        %577 = vmatpush1.msra.mxu0 %v444
        %578 = vmatprep.subr.mxu0 0.0
        %579 = vmatpush1.msra.mxu0 0.0
        %580 = vmatprep.subr.mxu0 0.0
        %581 = vmatpush1.msra.mxu0 0.0
        %582 = vmatprep.subr.mxu0 0.0
        %583 = vmatpush1.msra.mxu0 0.0
        %584 = vmatprep.subr.mxu0 0.0
        %585 = vmatpush1.msra.mxu0 0.0
        %586 = vmatprep.subr.mxu0 0.0
        %587 = vmatpush1.msra.mxu0 0.0
        %588 = vmatprep.subr.mxu0 0.0
        %589 = vmatpush1.msra.mxu0 0.0
        %590 = vmatprep.subr.mxu0 0.0
        %591 = vmatpush1.msra.mxu0 0.0
        %592 = vmatprep.subr.mxu0 0.0
        %593 = vmatpush1.msra.mxu0 0.0
        %594 = vmatprep.subr.mxu0 0.0
        %595 = vmatpush1.msra.mxu0 0.0
        %596 = vmatprep.subr.mxu0 0.0
        %597 = vmatpush1.msra.mxu0 0.0
        %598 = vmatprep.subr.mxu0 0.0
        %599 = vmatpush1.msra.mxu0 0.0
        %600 = vmatprep.subr.mxu0 0.0
        %601 = vmatpush1.msra.mxu0 0.0
        %602 = vmatprep.subr.mxu0 0.0
        %603 = vmatpush1.msra.mxu0 0.0
        %604 = vmatprep.subr.mxu0 0.0
        %605 = vmatpush1.msra.mxu0 0.0
        %606 = vmatprep.subr.mxu0 0.0
        %607 = vmatpush1.msra.mxu0 0.0
        %608 = vmatprep.subr.mxu0 0.0
        %609 = vmatpush1.msra.mxu0 0.0
        %610 = vmatprep.subr.mxu0 0.0
        %611 = vmatpush1.msra.mxu0 0.0
        %612 = vmatprep.subr.mxu0 0.0
        %613 = vmatpush1.msra.mxu0 0.0
        %614 = vmatprep.subr.mxu0 0.0
        %615 = vmatpush1.msra.mxu0 0.0
        %616 = vmatprep.subr.mxu0 0.0
        %617 = vmatpush1.msra.mxu0 0.0
        %618 = vmatprep.subr.mxu0 0.0
        %619 = vmatpush1.msra.mxu0 0.0
        %620 = vmatprep.subr.mxu0 0.0
        %621 = vmatpush1.msra.mxu0 0.0
        %622 = vmatprep.subr.mxu0 0.0
        %623 = vmatpush1.msra.mxu0 0.0
        %624 = vmatprep.subr.mxu0 0.0
        %625 = vmatpush1.msra.mxu0 0.0
        %626 = vmatprep.subr.mxu0 0.0
        %627 = vmatpush1.msra.mxu0 0.0
        %628 = vmatprep.subr.mxu0 0.0
        %629 = vmatpush1.msra.mxu0 0.0
        %630 = vmatprep.subr.mxu0 0.0
        %631 = vmatpush1.msra.mxu0 0.0
        %632 = vmatprep.subr.mxu0 0.0
        %633 = vmatpush1.msra.mxu0 0.0
        %634 = vmatprep.subr.mxu0 0.0
        %635 = vmatpush1.msra.mxu0 0.0
        %636 = vmatprep.subr.mxu0 0.0
        %637 = vmatpush1.msra.mxu0 0.0
        %638 = vmatprep.subr.mxu0 0.0
        %639 = vmatpush1.msra.mxu0 0.0
        %640 = vmatprep.mubr.f32.mxu0 0.0
        %641 = vmatmul.mubr.f32.gmra.mrb[0].mxu0 %v574
        %v642 = vpop.f32.mrb[0].mxu0
        %v643 = vadd.f32 %v569, %v642
        %v644 = vpop.f32.mrb[0].mxu0
        %645 = vdwg.mxu0
        %647 = vset.pattern.permute.xlu0 0
        %648 = vperm.xlu0 %647, %v491
        %v649 = vpop.permute.xlu0 %648
        %v651 = vadd.f32 %v643, %v649
        %v652 = vld [vmem:[%s413] sm:$0xff]
        %v653 = vld [vmem:[%s421] sm:$0xff]
        %v655 = vsel %vm494, %v653, 0
        %v658 = vsel %vm498, %v490, 0
        %660 = vmatprep.subr.mxu0 0.0
        %661 = vmatpush1.msra.mxu0 %v658
        %662 = vmatprep.subr.mxu0 0.0
        %663 = vmatpush1.msra.mxu0 0.0
        %664 = vmatprep.subr.mxu0 0.0
        %665 = vmatpush1.msra.mxu0 0.0
        %666 = vmatprep.subr.mxu0 0.0
        %667 = vmatpush1.msra.mxu0 0.0
        %668 = vmatprep.subr.mxu0 0.0
        %669 = vmatpush1.msra.mxu0 0.0
        %670 = vmatprep.subr.mxu0 0.0
        %671 = vmatpush1.msra.mxu0 0.0
        %672 = vmatprep.subr.mxu0 0.0
        %673 = vmatpush1.msra.mxu0 0.0
        %674 = vmatprep.subr.mxu0 0.0
        %675 = vmatpush1.msra.mxu0 0.0
        %676 = vmatprep.subr.mxu0 0.0
        %677 = vmatpush1.msra.mxu0 0.0
        %678 = vmatprep.subr.mxu0 0.0
        %679 = vmatpush1.msra.mxu0 0.0
        %680 = vmatprep.subr.mxu0 0.0
        %681 = vmatpush1.msra.mxu0 0.0
        %682 = vmatprep.subr.mxu0 0.0
        %683 = vmatpush1.msra.mxu0 0.0
        %684 = vmatprep.subr.mxu0 0.0
        %685 = vmatpush1.msra.mxu0 0.0
        %686 = vmatprep.subr.mxu0 0.0
        %687 = vmatpush1.msra.mxu0 0.0
        %688 = vmatprep.subr.mxu0 0.0
        %689 = vmatpush1.msra.mxu0 0.0
        %690 = vmatprep.subr.mxu0 0.0
        %691 = vmatpush1.msra.mxu0 0.0
        %692 = vmatprep.subr.mxu0 0.0
        %693 = vmatpush1.msra.mxu0 0.0
        %694 = vmatprep.subr.mxu0 0.0
        %695 = vmatpush1.msra.mxu0 0.0
        %696 = vmatprep.subr.mxu0 0.0
        %697 = vmatpush1.msra.mxu0 0.0
        %698 = vmatprep.subr.mxu0 0.0
        %699 = vmatpush1.msra.mxu0 0.0
        %700 = vmatprep.subr.mxu0 0.0
        %701 = vmatpush1.msra.mxu0 0.0
        %702 = vmatprep.subr.mxu0 0.0
        %703 = vmatpush1.msra.mxu0 0.0
        %704 = vmatprep.subr.mxu0 0.0
        %705 = vmatpush1.msra.mxu0 0.0
        %706 = vmatprep.subr.mxu0 0.0
        %707 = vmatpush1.msra.mxu0 0.0
        %708 = vmatprep.subr.mxu0 0.0
        %709 = vmatpush1.msra.mxu0 0.0
        %710 = vmatprep.subr.mxu0 0.0
        %711 = vmatpush1.msra.mxu0 0.0
        %712 = vmatprep.subr.mxu0 0.0
        %713 = vmatpush1.msra.mxu0 0.0
        %714 = vmatprep.subr.mxu0 0.0
        %715 = vmatpush1.msra.mxu0 0.0
        %716 = vmatprep.subr.mxu0 0.0
        %717 = vmatpush1.msra.mxu0 0.0
        %718 = vmatprep.subr.mxu0 0.0
        %719 = vmatpush1.msra.mxu0 0.0
        %720 = vmatprep.subr.mxu0 0.0
        %721 = vmatpush1.msra.mxu0 0.0
        %722 = vmatprep.subr.mxu0 0.0
        %723 = vmatpush1.msra.mxu0 0.0
        %724 = vmatprep.mubr.f32.mxu0 0.0
        %725 = vmatmul.mubr.f32.gmra.mrb[0].mxu0 %v655
        %v726 = vpop.f32.mrb[0].mxu0
        %v727 = vadd.f32 0.0, %v726
        %v728 = vpop.f32.mrb[0].mxu0
        %729 = vdwg.mxu0
        %v731 = vsel %vm572, %v652, 0
        %733 = vmatprep.subr.mxu0 0.0
        %734 = vmatpush1.msra.mxu0 %v444
        %735 = vmatprep.subr.mxu0 0.0
        %736 = vmatpush1.msra.mxu0 0.0
        %737 = vmatprep.subr.mxu0 0.0
        %738 = vmatpush1.msra.mxu0 0.0
        %739 = vmatprep.subr.mxu0 0.0
        %740 = vmatpush1.msra.mxu0 0.0
        %741 = vmatprep.subr.mxu0 0.0
        %742 = vmatpush1.msra.mxu0 0.0
        %743 = vmatprep.subr.mxu0 0.0
        %744 = vmatpush1.msra.mxu0 0.0
        %745 = vmatprep.subr.mxu0 0.0
        %746 = vmatpush1.msra.mxu0 0.0
        %747 = vmatprep.subr.mxu0 0.0
        %748 = vmatpush1.msra.mxu0 0.0
        %749 = vmatprep.subr.mxu0 0.0
        %750 = vmatpush1.msra.mxu0 0.0
        %751 = vmatprep.subr.mxu0 0.0
        %752 = vmatpush1.msra.mxu0 0.0
        %753 = vmatprep.subr.mxu0 0.0
        %754 = vmatpush1.msra.mxu0 0.0
        %755 = vmatprep.subr.mxu0 0.0
        %756 = vmatpush1.msra.mxu0 0.0
        %757 = vmatprep.subr.mxu0 0.0
        %758 = vmatpush1.msra.mxu0 0.0
        %759 = vmatprep.subr.mxu0 0.0
        %760 = vmatpush1.msra.mxu0 0.0
        %761 = vmatprep.subr.mxu0 0.0
        %762 = vmatpush1.msra.mxu0 0.0
        %763 = vmatprep.subr.mxu0 0.0
        %764 = vmatpush1.msra.mxu0 0.0
        %765 = vmatprep.subr.mxu0 0.0
        %766 = vmatpush1.msra.mxu0 0.0
        %767 = vmatprep.subr.mxu0 0.0
        %768 = vmatpush1.msra.mxu0 0.0
        %769 = vmatprep.subr.mxu0 0.0
        %770 = vmatpush1.msra.mxu0 0.0
        %771 = vmatprep.subr.mxu0 0.0
        %772 = vmatpush1.msra.mxu0 0.0
        %773 = vmatprep.subr.mxu0 0.0
        %774 = vmatpush1.msra.mxu0 0.0
        %775 = vmatprep.subr.mxu0 0.0
        %776 = vmatpush1.msra.mxu0 0.0
        %777 = vmatprep.subr.mxu0 0.0
        %778 = vmatpush1.msra.mxu0 0.0
        %779 = vmatprep.subr.mxu0 0.0
        %780 = vmatpush1.msra.mxu0 0.0
        %781 = vmatprep.subr.mxu0 0.0
        %782 = vmatpush1.msra.mxu0 0.0
        %783 = vmatprep.subr.mxu0 0.0
        %784 = vmatpush1.msra.mxu0 0.0
        %785 = vmatprep.subr.mxu0 0.0
        %786 = vmatpush1.msra.mxu0 0.0
        %787 = vmatprep.subr.mxu0 0.0
        %788 = vmatpush1.msra.mxu0 0.0
        %789 = vmatprep.subr.mxu0 0.0
        %790 = vmatpush1.msra.mxu0 0.0
        %791 = vmatprep.subr.mxu0 0.0
        %792 = vmatpush1.msra.mxu0 0.0
        %793 = vmatprep.subr.mxu0 0.0
        %794 = vmatpush1.msra.mxu0 0.0
        %795 = vmatprep.subr.mxu0 0.0
        %796 = vmatpush1.msra.mxu0 0.0
        %797 = vmatprep.mubr.f32.mxu0 0.0
        %798 = vmatmul.mubr.f32.gmra.mrb[0].mxu0 %v731
        %v799 = vpop.f32.mrb[0].mxu0
        %v800 = vadd.f32 %v727, %v799
        %v801 = vpop.f32.mrb[0].mxu0
        %802 = vdwg.mxu0
        %v803 = vadd.f32 %v800, %v649
        // Predicated region
        $region57: #{tpu_custom_call.1} parent=51 // pred_check
          %p804 = pneg %p434
        $region58: #{tpu_custom_call.1} parent=51 // pred_check_branch
          %806 = sbr.rel (%p804) target = $region60
        $region59: #{tpu_custom_call.1} parent=51 // pred_region
          %vm807 = vcmask 130048
          %v808 = vsel %vm807, %v651, 0.0
          %809 = vadd.xlane.f32.xlu0 %v808
          %v810 = vpop.xlane.xlu0 %809
          %v811 = vsel %vm807, %v803, 0.0
          %812 = vadd.xlane.f32.xlu0 %v811
          %v813 = vpop.xlane.xlu0 %812
          %v814 = vadd.f32 %v810, %v813
          %v815 = vmul.f32 %v814, 0.03125
          %v816 = vsub.f32 %v651, %v815
          %v817 = vsub.f32 %v803, %v815
          %v818 = vmul.f32 %v816, %v816
          %v819 = vsel %vm807, %v818, 0.0
          %820 = vadd.xlane.f32.xlu0 %v819
          %v821 = vpop.xlane.xlu0 %820
          %v822 = vmul.f32 %v817, %v817
          %v823 = vsel %vm807, %v822, 0.0
          %824 = vadd.xlane.f32.xlu0 %v823
          %v825 = vpop.xlane.xlu0 %824
          %v826 = vadd.f32 %v821, %v825
          %v827 = vld [vmem:[#allocation2] sm:$0xff]
          %v828 = vadd.f32 %v827, %v814
          %vm829 = vcmask 7168
          %830 = vst.msk [vmem:[#allocation2] sm:$0xff] %vm829, %v828
          %v831 = vld [vmem:[#allocation3] sm:$0xff]
          %v832 = vadd.f32 %v831, %v826
          %833 = vst.msk [vmem:[#allocation3] sm:$0xff] %vm829, %v832
          %v834 = vld [vmem:[#allocation4] sm:$0xff]
          %v835 = vmul.f32 %v815, %v815
          %v836 = vmul.f32 %v835, 32.0
          %v837 = vadd.f32 %v834, %v836
          %838 = vst.msk [vmem:[#allocation4] sm:$0xff] %vm829, %v837
        $region60: #{tpu_custom_call.1} parent=51 // pred_fallthru
          _
        %p839 = scmp.eq.s32.totalorder %s26, 1
        // Predicated region
        $region61: #{tpu_custom_call.1} parent=51 // pred_check
          %p840 = pneg %p839
        $region62: #{tpu_custom_call.1} parent=51 // pred_check_branch
          %842 = sbr.rel (%p840) target = $region64
        $region63: #{tpu_custom_call.1} parent=51 // pred_region
          %v843 = vld [vmem:[#allocation2] sm:$0xff]
          %v844 = vmul.f32 %v843, 0.03125
          %v845 = vld [vmem:[#allocation3] sm:$0xff]
          %v846 = vmul.f32 %v845, 0.03125
          %v847 = vld [vmem:[#allocation4] sm:$0xff]
          %v848 = vmul.f32 %v847, 0.03125
          %v849 = vmul.f32 %v844, %v844
          %v850 = vsub.f32 %v848, %v849
          %v851 = vmax.f32 %v850, 0.0
          %v852 = vadd.f32 %v846, %v851
          %v853 = vld [vmem:[%s429] sm:$0xff]
          %v854 = vadd.f32 %v852, 1e-05
          %v855 = vrsqrt.pop %v854
          %v856 = vmul.f32 %v853, %v855
          %v857 = vld [vmem:[%s433] sm:$0xff]
          %v858 = vmul.f32 %v856, %v844
          %v859 = vsub.f32 %v857, %v858
          %861 = vset.pattern.permute.xlu0 0
          %862 = vperm.xlu0 %861, %v856
          %v863 = vpop.permute.xlu0 %862
          %v865 = vmul.f32 %v863, %v651
          %867 = vset.pattern.permute.xlu0 0
          %868 = vperm.xlu0 %867, %v859
          %v869 = vpop.permute.xlu0 %868
          %v871 = vadd.f32 %v865, %v869
          %v872 = vmax.f32 %v871, 0.0
          %v873 = vmul.f32 %v863, %v803
          %v874 = vadd.f32 %v873, %v869
          %v875 = vmax.f32 %v874, 0.0
          %v876 = vmax.f32 %v872, %v875
          %vm877 = vcmask 130048
          %878 = vst.msk [vmem:[#allocation5] sm:$0xff] %vm877, %v876
        $region64: #{tpu_custom_call.1} parent=51 // pred_fallthru
          _
        // Predicated region
        $region65: #{tpu_custom_call.1} parent=51 // pred_check
          %p879 = pneg %p267
        $region66: #{tpu_custom_call.1} parent=51 // pred_check_branch
          %881 = sbr.rel (%p879) target = $region68
        $region67: #{tpu_custom_call.1} parent=51 // pred_region
          %s883 = ssub.s32 128, 128
          %884 = vsyncadd [#allocation6], %s883
          %s885 = sadd.s32 %s27, %s25
          %s886 = smul.addr %s885, 128
          %s887 = scalar_lea.hbm %s8, %s886
          %s889 = sshll.u32 [#allocation5], 4
          %s890 = int_to_ptr.vmem [resolvable:$true] %s889
          %892 = dma.vmem_to_hbm [thread:$0]  %s890, 128, %s887, [#allocation6]
        $region68: #{tpu_custom_call.1} parent=51 // pred_fallthru
          _
        // Predicated region
        $region69: #{tpu_custom_call.1} parent=51 // pred_check
          %p893 = pneg %p267
        $region70: #{tpu_custom_call.1} parent=51 // pred_check_branch
          %895 = sbr.rel (%p893) target = $region72
        $region71: #{tpu_custom_call.1} parent=51 // pred_region
          %896 = dma.done [#allocation6], 128
        $region72: #{tpu_custom_call.1} parent=51 // pred_fallthru
          _
      $region52: #{tpu_custom_call.1} parent=5 // pred_fallthru
        _
      %p897 = scmp.le.s32.totalorder 2, %s15
      // Predicated region
      $region73: #{tpu_custom_call.1} parent=5 // pred_check
        %p898 = pneg %p897
      $region74: #{tpu_custom_call.1} parent=5 // pred_check_branch
        %900 = sbr.rel (%p898) target = $region76
      $region75: #{tpu_custom_call.1} parent=5 // pred_region
        %s901 = ssub.s32 %s15, 2
      $region76: #{tpu_custom_call.1} parent=5 // pred_fallthru
        _
    $region6: #{tpu_custom_call.1} parent=1 // loop_footer
      %s19 = sadd.s32 1, %s15
    $region7: #{tpu_custom_call.1} parent=1 // loop_footer_branch
      %14 = sbr.rel target = $region3
    $region8: #{tpu_custom_call.1} parent=1 // loop_exit
      _
    %902 = vsyncpa [#allocation6], 1
    %s903 = scalar_lea.sflag [#allocation6], 1
    %904 = vsyncpa %s903, 1

</llo_original>
